<compile_context>
chip_gen: v7x
topology: tpu7x:2x2x1
jax: 0.10.0
libtpu: 0.0.40
codegen_flags: <defaults>
</compile_context>

<pallas_src>
import functools

import jax
import jax.numpy as jnp
import numpy as np
from jax.experimental import pallas as pl
from jax.experimental.pallas import tpu as pltpu

USE_COUNTER = True  # mirrors the torch module flag (counter module itself is absent)


def _round_up(x, m):
    return ((x + m - 1) // m) * m


# --------------------------------------------------------------------------
# Generation-gated hardware config (tile sizes, VMEM budget, 2-TC splitting)
# --------------------------------------------------------------------------
_HW_CACHE = None


def _hw_config():
    """Returns (tm, tn, tk, vmem_limit_bytes, split_for_cores)."""
    global _HW_CACHE
    if _HW_CACHE is None:
        try:
            vmem = int(pltpu.get_tpu_info().vmem_capacity_bytes)
        except Exception:
            vmem = 64 * 1024 * 1024          # conservative fallback (v7x-sized)
        small_vmem = vmem <= 80 * 1024 * 1024  # v7x: 64 MiB per TensorCore, 2 TCs
        if small_vmem:
            tm, tn, tk = 512, 512, 512
            vmem_limit = min(56 * 1024 * 1024, int(vmem * 0.85))
        else:                                  # v5e / v6e: 128 MiB VMEM, 1 TC
            tm, tn, tk = 512, 512, 1024
            vmem_limit = 96 * 1024 * 1024
        _HW_CACHE = (tm, tn, tk, vmem_limit, small_vmem)
    return _HW_CACHE


def _pick_rows_block(M, tm, split_for_cores):
    """Row-block size: full extent when it fits a tile; split in two on v7x so the
    'parallel' M axis feeds both TensorCores; tile-sized (with pad) otherwise."""
    if M > tm:
        return tm
    if split_for_cores and M > 8 and M % 16 == 0:
        return M // 2
    return M


def _pick_batch_block(B, tb, split_for_cores):
    TB = min(B, tb)
    if split_for_cores and B >= 2 and (B // TB) < 2:
        TB = max(1, B // 2)
    return TB


# --------------------------------------------------------------------------
# Tiled linear kernel (generic FCNet layer): out = [ReLU](x @ W + b)
# bf16 cast happens in-kernel on the loaded tile; f32 accumulation on the MXU.
# --------------------------------------------------------------------------
def _linear_kernel(x_ref, w_ref, b_ref, o_ref, acc_ref, *, relu):
    @pl.when(pl.program_id(2) == 0)
    def _():
        acc_ref[...] = jnp.zeros_like(acc_ref)

    acc_ref[...] += jnp.dot(x_ref[...].astype(jnp.bfloat16),
                            w_ref[...].astype(jnp.bfloat16),
                            preferred_element_type=jnp.float32)

    @pl.when(pl.program_id(2) == pl.num_programs(2) - 1)
    def _():
        out = acc_ref[...] + b_ref[...]
        if relu:
            out = jnp.maximum(out, 0.0)
        o_ref[...] = out.astype(o_ref.dtype)


def linear(x, w, b, relu):
    """x: [M, Din] @ w: [Din, Dout] + b: [Dout] -> [M, Dout] f32 (optional ReLU)."""
    M, K = x.shape
    N = w.shape[1]
    tm, tn, tk, vmem_limit, split_cores = _hw_config()
    bm = _pick_rows_block(M, tm, split_cores)
    bk = K if K <= tk else tk
    bn = N if N <= tn else tn
    Mp, Kp, Np = _round_up(M, bm), _round_up(K, bk), _round_up(N, bn)

    xp = x if (Mp, Kp) == (M, K) else jnp.pad(x, ((0, Mp - M), (0, Kp - K)))
    wpad = w if (Kp, Np) == (K, N) else jnp.pad(w, ((0, Kp - K), (0, Np - N)))
    brow = b.reshape(1, N)
    bpad = brow if Np == N else jnp.pad(brow, ((0, 0), (0, Np - N)))

    out = pl.pallas_call(
        functools.partial(_linear_kernel, relu=relu),
        out_shape=jax.ShapeDtypeStruct((Mp, Np), jnp.float32),
        grid=(Mp // bm, Np // bn, Kp // bk),
        in_specs=[
            pl.BlockSpec((bm, bk), lambda i, j, k: (i, k)),
            pl.BlockSpec((bk, bn), lambda i, j, k: (k, j)),
            pl.BlockSpec((1, bn), lambda i, j, k: (0, j)),
        ],
        out_specs=pl.BlockSpec((bm, bn), lambda i, j, k: (i, j)),
        scratch_shapes=[pltpu.VMEM((bm, bn), jnp.float32)],
        compiler_params=pltpu.CompilerParams(
            dimension_semantics=("parallel", "parallel", "arbitrary"),
            vmem_limit_bytes=vmem_limit),
    )(xp, wpad, bpad)
    if (Mp, Np) != (M, N):
        out = out[:M, :N]
    return out


# --------------------------------------------------------------------------
# Fused FCNet: the whole layer stack in a single pallas_call.
# Inter-layer activations never touch HBM; one kernel launch total.
# --------------------------------------------------------------------------
def _fcnet_fused_kernel(*refs, n_layers, relu):
    x_ref, o_ref = refs[0], refs[-1]
    x = x_ref[...]
    for l in range(n_layers):
        w = refs[1 + 2 * l][...].astype(jnp.bfloat16)
        bvec = refs[2 + 2 * l][...]
        x = jnp.dot(x.astype(jnp.bfloat16), w,
                    preferred_element_type=jnp.float32) + bvec
        if relu:
            x = jnp.maximum(x, 0.0)
    o_ref[...] = x.astype(o_ref.dtype)


def fcnet_forward(fc_params, x, relu=True):
    """FCNet.forward: stack of weight_norm Linear (+ReLU); Dropout = identity (eval)."""
    tm, tn, tk, vmem_limit, split_cores = _hw_config()
    M, K0 = x.shape
    bm = _pick_rows_block(M, tm, split_cores)

    dims_ok = (K0 <= tk) and all(w.shape[0] <= tk and w.shape[1] <= tn
                                 for w, _ in fc_params)
    w_bytes = sum(w.size + b.size for w, b in fc_params) * 4
    max_feat = max([K0] + [w.shape[1] for w, _ in fc_params])
    act_bytes = bm * max_feat * 4
    if not (dims_ok and (2 * w_bytes + 6 * act_bytes) < vmem_limit // 2):
        # fall back to the generic tiled layer-by-layer path
        for w, b in fc_params:
            x = linear(x, w, b, relu=relu)
        return x

    Mp = _round_up(M, bm)
    xp = x if Mp == M else jnp.pad(x, ((0, Mp - M), (0, 0)))

    in_specs = [pl.BlockSpec((bm, K0), lambda i: (i, 0))]
    operands = [xp]
    for w, bvec in fc_params:
        Kl, Nl = w.shape
        in_specs.append(pl.BlockSpec((Kl, Nl), lambda i: (0, 0)))
        in_specs.append(pl.BlockSpec((1, Nl), lambda i: (0, 0)))
        operands.append(w)
        operands.append(bvec.reshape(1, Nl))
    N_last = fc_params[-1][0].shape[1]

    out = pl.pallas_call(
        functools.partial(_fcnet_fused_kernel, n_layers=len(fc_params), relu=relu),
        out_shape=jax.ShapeDtypeStruct((Mp, N_last), jnp.float32),
        grid=(Mp // bm,),
        in_specs=in_specs,
        out_specs=pl.BlockSpec((bm, N_last), lambda i: (i, 0)),
        compiler_params=pltpu.CompilerParams(
            dimension_semantics=("parallel",),
            vmem_limit_bytes=vmem_limit),
    )(*operands)
    return out if Mp == M else out[:M]


# --------------------------------------------------------------------------
# BiAttention kernel: a batch chunk x one glimpse per grid step.
# Only the softmaxed attention is emitted (unused logits output dropped).
# --------------------------------------------------------------------------
def _biattn_kernel(mask_ref, v_ref, q_ref, hmat_ref, hbias_ref, p_ref):
    # fold h_mat into the smaller q side (Q << V): (v_) @ (q_ * h)^T
    qh = q_ref[...] * hmat_ref[...]                               # (TB, Q, K)
    s = jnp.einsum("bvk,bqk->bvq",
                   v_ref[...].astype(jnp.bfloat16),
                   qh.astype(jnp.bfloat16),
                   preferred_element_type=jnp.float32)            # (TB, V, Q)
    s = s + hbias_ref[...]
    s = jnp.where(mask_ref[...] > 0.0, s, -jnp.inf)               # zero v rows -> -inf
    m = jnp.max(s, axis=(1, 2), keepdims=True)
    e = jnp.exp(s - m)
    denom = jnp.sum(e, axis=(1, 2), keepdims=True)
    p_ref[...] = e * pl.reciprocal(denom, approx=True)            # EUP-slot divide


def biattention(v_mask, v_, q_, h_mat, h_bias, *, tb=8):
    """Returns softmaxed attention p: [B, G, V, Q]."""
    B, V, Kd = v_.shape
    Q = q_.shape[1]
    G = h_mat.shape[0]
    _, _, _, vmem_limit, split_cores = _hw_config()
    TB = _pick_batch_block(B, tb, split_cores)
    Bp = _round_up(B, TB)
    if Bp != B:
        pad = Bp - B
        v_mask = jnp.pad(v_mask, ((0, pad), (0, 0), (0, 0)), constant_values=1.0)
        v_ = jnp.pad(v_, ((0, pad), (0, 0), (0, 0)))
        q_ = jnp.pad(q_, ((0, pad), (0, 0), (0, 0)))
    hm = h_mat.reshape(G, 1, Kd)
    hb = h_bias.reshape(G, 1, 1)
    # TODO(synk): a lane-dense (B, G, V*Q) output and a single (V,K)x(K,G*Q) matmul
    # across all glimpses were skipped to avoid in-kernel cross-lane relayouts at Q=8.
    p = pl.pallas_call(
        _biattn_kernel,
        out_shape=jax.ShapeDtypeStruct((Bp, G, V, Q), jnp.float32),
        grid=(Bp // TB, G),
        in_specs=[
            pl.BlockSpec((TB, V, 1), lambda bi, g: (bi, 0, 0)),
            pl.BlockSpec((TB, V, Kd), lambda bi, g: (bi, 0, 0)),
            pl.BlockSpec((TB, Q, Kd), lambda bi, g: (bi, 0, 0)),
            pl.BlockSpec((None, 1, Kd), lambda bi, g: (g, 0, 0)),
            pl.BlockSpec((None, 1, 1), lambda bi, g: (g, 0, 0)),
        ],
        out_specs=pl.BlockSpec((TB, None, V, Q), lambda bi, g: (bi, g, 0, 0)),
        compiler_params=pltpu.CompilerParams(
            dimension_semantics=("parallel", "parallel"),
            vmem_limit_bytes=vmem_limit),
    )(v_mask, v_, q_, hm, hb)
    return p if Bp == B else p[:B]


# --------------------------------------------------------------------------
# Fused glimpse stack: the ENTIRE per-glimpse tail loop in one pallas_call.
# grid = (batch chunks, G); g is "arbitrary"; q_cur is carried in VMEM scratch.
# --------------------------------------------------------------------------
def _glimpse_kernel(qemb_ref, v_ref, att_ref, wv_ref, bv_ref, wq_ref, bq_ref,
                    wp_ref, bp_ref, o_ref, qcur_ref):
    g = pl.program_id(1)

    @pl.when(g == 0)
    def _():
        qcur_ref[...] = qemb_ref[...]

    TB, Qd, H = qcur_ref.shape
    V, Dv = v_ref.shape[1], v_ref.shape[2]

    # b_net[g].v_net: ReLU(v_relation @ Wv + bv)                  (TB, V, H)
    vb = jnp.dot(v_ref[...].reshape(TB * V, Dv).astype(jnp.bfloat16),
                 wv_ref[...].astype(jnp.bfloat16),
                 preferred_element_type=jnp.float32).reshape(TB, V, H)
    vb = jnp.maximum(vb + bv_ref[...], 0.0)

    # b_net[g].q_net: ReLU(q_cur @ Wq + bq)                       (TB, Q, H)
    q_cur = qcur_ref[...]
    qb = jnp.dot(q_cur.reshape(TB * Qd, H).astype(jnp.bfloat16),
                 wq_ref[...].astype(jnp.bfloat16),
                 preferred_element_type=jnp.float32).reshape(TB, Qd, H)
    qb = jnp.maximum(qb + bq_ref[...], 0.0)

    # bilinear attention pooling: b_emb[b,h] = sum_{v,q} vb * att * qb
    att = att_ref[...]                                            # (TB, V, Q)
    tmp = jnp.einsum("bvq,bqh->bvh", att.astype(jnp.bfloat16),
                     qb.astype(jnp.bfloat16),
                     preferred_element_type=jnp.float32)          # (TB, V, H)
    b_emb = jnp.sum(tmp * vb, axis=1)                             # (TB, H)

    # q_prj[g] (FCNet [H,H], act='') + residual
    proj = jnp.dot(b_emb.astype(jnp.bfloat16), wp_ref[...].astype(jnp.bfloat16),
                   preferred_element_type=jnp.float32) + bp_ref[...]
    q_new = q_cur + proj[:, None, :]
    qcur_ref[...] = q_new

    @pl.when(g == pl.num_programs(1) - 1)
    def _():
        o_ref[...] = q_new.astype(o_ref.dtype)


def glimpse_stack(q_emb, v_rel, att, wv_s, bv_s, wq_s, bq_s, wp_s, bp_s, *, tb=8):
    B, Q, H = q_emb.shape
    V, Dv = v_rel.shape[1], v_rel.shape[2]
    G = wv_s.shape[0]
    _, _, _, vmem_limit, split_cores = _hw_config()
    TB = _pick_batch_block(B, tb, split_cores)
    Bp = _round_up(B, TB)
    if Bp != B:
        pad = Bp - B
        q_emb = jnp.pad(q_emb, ((0, pad), (0, 0), (0, 0)))
        v_rel = jnp.pad(v_rel, ((0, pad), (0, 0), (0, 0)))
        att = jnp.pad(att, ((0, pad), (0, 0), (0, 0), (0, 0)))
    out = pl.pallas_call(
        _glimpse_kernel,
        out_shape=jax.ShapeDtypeStruct((Bp, Q, H), jnp.float32),
        grid=(Bp // TB, G),
        in_specs=[
            pl.BlockSpec((TB, Q, H), lambda bi, g: (bi, 0, 0)),          # q_emb
            pl.BlockSpec((TB, V, Dv), lambda bi, g: (bi, 0, 0)),         # v_relation
            pl.BlockSpec((TB, None, V, Q), lambda bi, g: (bi, g, 0, 0)),  # att[:, g]
            pl.BlockSpec((None, Dv, H), lambda bi, g: (g, 0, 0)),        # Wv[g]
            pl.BlockSpec((None, 1, H), lambda bi, g: (g, 0, 0)),         # bv[g]
            pl.BlockSpec((None, H, H), lambda bi, g: (g, 0, 0)),         # Wq[g]
            pl.BlockSpec((None, 1, H), lambda bi, g: (g, 0, 0)),         # bq[g]
            pl.BlockSpec((None, H, H), lambda bi, g: (g, 0, 0)),         # Wp[g]
            pl.BlockSpec((None, 1, H), lambda bi, g: (g, 0, 0)),         # bp[g]
        ],
        out_specs=pl.BlockSpec((TB, Q, H), lambda bi, g: (bi, 0, 0)),
        scratch_shapes=[pltpu.VMEM((TB, Q, H), jnp.float32)],
        compiler_params=pltpu.CompilerParams(
            dimension_semantics=("parallel", "arbitrary"),
            vmem_limit_bytes=vmem_limit),
    )(q_emb, v_rel, att, wv_s, bv_s, wq_s, bq_s, wp_s, bp_s)
    return out if Bp == B else out[:B]


# --------------------------------------------------------------------------
# Parameters (deterministic synthetic init; weight_norm(dim=None) folded in)
# --------------------------------------------------------------------------
def weight_norm_effective(key, in_dim, out_dim):
    kv, kg, kb = jax.random.split(key, 3)
    v = 0.1 * jax.random.normal(kv, (in_dim, out_dim), jnp.float32)
    g = 1.0 + 0.05 * jax.random.normal(kg, (), jnp.float32)
    b = 0.1 * jax.random.normal(kb, (out_dim,), jnp.float32)
    w_eff = g * v / jnp.sqrt(jnp.sum(v * v))      # weight_norm with dim=None
    return w_eff, b


def init_params(key, Dv, H, G, K=3):
    ks = iter(jax.random.split(key, 4 + 3 * G))
    p = {}
    p["att_v_w"], p["att_v_b"] = weight_norm_effective(next(ks), Dv, H * K)
    p["att_q_w"], p["att_q_b"] = weight_norm_effective(next(ks), H, H * K)
    p["h_mat"] = jax.random.normal(next(ks), (G, H * K), jnp.float32)
    p["h_bias"] = jax.random.normal(next(ks), (G,), jnp.float32)
    p["b_v"], p["b_q"], p["q_prj"] = [], [], []
    for _ in range(G):
        p["b_v"].append(weight_norm_effective(next(ks), Dv, H))   # b_net[g].v_net (k=1)
        p["b_q"].append(weight_norm_effective(next(ks), H, H))    # b_net[g].q_net (k=1)
        p["q_prj"].append(weight_norm_effective(next(ks), H, H))  # q_prj[g] (no act)
    return p


# --------------------------------------------------------------------------
# BAN forward (Pallas-backed)
# --------------------------------------------------------------------------
def ban_forward(params, v_relation, q_emb, b):
    B, V, Dv = v_relation.shape
    Q, H = q_emb.shape[1], q_emb.shape[2]
    G = params["h_mat"].shape[0]

    if USE_COUNTER:
        # mirrors torch: boxes computed but never consumed (no counter module built)
        _boxes = jnp.transpose(b[:, :, :4], (0, 2, 1))

    # zero-object-row mask precomputed once (B,V,1): no full (V,Dv) DMA in the kernel
    v_mask = (jnp.sum(jnp.abs(v_relation), axis=2, keepdims=True) > 0.0).astype(jnp.float32)

    # BiAttention projections (single-layer FCNets) via the tiled linear kernel
    v_ = linear(v_relation.reshape(B * V, Dv),
                params["att_v_w"], params["att_v_b"], relu=True).reshape(B, V, -1)
    q_ = linear(q_emb.reshape(B * Q, H),
                params["att_q_w"], params["att_q_b"], relu=True).reshape(B, Q, -1)
    att = biattention(v_mask, v_, q_, params["h_mat"], params["h_bias"])
    # TODO(synk): torch computes `atten = logits[:,g].max(2)` per glimpse for the counter
    # module, which is absent; skipped (the unused logits output is also dropped).

    # stacked per-glimpse weights consumed by the single fused glimpse kernel
    wv_s = jnp.stack([params["b_v"][g][0] for g in range(G)])              # (G, Dv, H)
    bv_s = jnp.stack([params["b_v"][g][1] for g in range(G)])[:, None, :]  # (G, 1, H)
    wq_s = jnp.stack([params["b_q"][g][0] for g in range(G)])
    bq_s = jnp.stack([params["b_q"][g][1] for g in range(G)])[:, None, :]
    wp_s = jnp.stack([params["q_prj"][g][0] for g in range(G)])
    bp_s = jnp.stack([params["q_prj"][g][1] for g in range(G)])[:, None, :]

    q_final = glimpse_stack(q_emb, v_relation, att,
                            wv_s, bv_s, wq_s, bq_s, wp_s, bp_s)
    joint_emb = jnp.sum(q_final, axis=1)
    return joint_emb, att


# --------------------------------------------------------------------------
# Pure-JAX references (same math, same bf16-in/f32-acc matmul precision)
# --------------------------------------------------------------------------
def _mm_ref(a, b):
    return jnp.matmul(a.astype(jnp.bfloat16), b.astype(jnp.bfloat16),
                      preferred_element_type=jnp.float32)


def fcnet_reference(fc_params, x, relu=True):
    for w, b in fc_params:
        x = _mm_ref(x, w) + b
        if relu:
            x = jnp.maximum(x, 0.0)
    return x


def ban_reference(params, v_relation, q_emb):
    B, V, _ = v_relation.shape
    Q = q_emb.shape[1]
    G = params["h_mat"].shape[0]
    relu = lambda x: jnp.maximum(x, 0.0)

    v_ = relu(_mm_ref(v_relation, params["att_v_w"]) + params["att_v_b"])
    q_ = relu(_mm_ref(q_emb, params["att_q_w"]) + params["att_q_b"])
    valid = jnp.sum(jnp.abs(v_relation), axis=2, keepdims=True) > 0.0      # (B,V,1)
    ps = []
    for g in range(G):
        qh = q_ * params["h_mat"][g][None, None, :]
        s = jnp.einsum("bvk,bqk->bvq", v_.astype(jnp.bfloat16), qh.astype(jnp.bfloat16),
                       preferred_element_type=jnp.float32) + params["h_bias"][g]
        s = jnp.where(valid, s, -jnp.inf)
        ps.append(jax.nn.softmax(s.reshape(B, V * Q), axis=1).reshape(B, V, Q))
    p = jnp.stack(ps, axis=1)                                              # (B,G,V,Q)

    q_cur = q_emb
    for g in range(G):
        wv, bv = params["b_v"][g]
        wq, bq = params["b_q"][g]
        wp, bp = params["q_prj"][g]
        vb = relu(_mm_ref(v_relation, wv) + bv)
        qb = relu(_mm_ref(q_cur, wq) + bq)
        tmp = jnp.einsum("bvq,bqh->bvh", p[:, g].astype(jnp.bfloat16),
                         qb.astype(jnp.bfloat16), preferred_element_type=jnp.float32)
        b_emb = jnp.sum(tmp * vb, axis=1)
        q_cur = (_mm_ref(b_emb, wp) + bp)[:, None, :] + q_cur
    return jnp.sum(q_cur, axis=1), p


# --------------------------------------------------------------------------
if __name__ == "__main__":
    B, V, Q, Dv, H, G = 2, 16, 8, 32, 32, 2   # batch, objects, q-len, v_dim, num_hid, gamma
    key = jax.random.PRNGKey(0)
    kp, kf, kv, kq, kb, kx = jax.random.split(key, 6)

    # --- standalone FCNet check (the literal spec module): dims [32, 64, 32], ReLU ---
    k1, k2 = jax.random.split(kf)
    fc_params = [weight_norm_effective(k1, 32, 64), weight_norm_effective(k2, 64, 32)]
    x = jax.random.normal(kx, (16, 32), jnp.float32)
    y = fcnet_forward(fc_params, x)
    jax.block_until_ready(y)
    np.testing.assert_allclose(np.asarray(y), np.asarray(fcnet_reference(fc_params, x)),
                               rtol=2e-3, atol=2e-3)

    # --- BAN forward (FCNet provides every projection inside it) ---
    params = init_params(kp, Dv, H, G)
    v_relation = jax.random.normal(kv, (B, V, Dv), jnp.float32)
    v_relation = v_relation.at[0, V - 2:].set(0.0)   # exercise the zero-row mask path
    q_emb = jax.random.normal(kq, (B, Q, H), jnp.float32)
    b = jax.random.normal(kb, (B, V, 6), jnp.float32)   # boxes-like tensor (only sliced)

    joint_emb, att = ban_forward(params, v_relation, q_emb, b)
    jax.block_until_ready((joint_emb, att))

    ref_joint, ref_att = ban_reference(params, v_relation, q_emb)
    np.testing.assert_allclose(np.asarray(att), np.asarray(ref_att), rtol=2e-3, atol=2e-3)
    np.testing.assert_allclose(np.asarray(joint_emb), np.asarray(ref_joint), rtol=2e-3, atol=2e-3)

    print("KERNEL_OK")
</pallas_src>

<mosaic_0001>
module attributes {stable_mosaic.version = 11 : i64} {
  func.func @_fcnet_fused_kernel(%arg0: i32, %arg1: memref<8x32xf32, #tpu.memory_space<vmem>>, %arg2: memref<32x64xf32, #tpu.memory_space<vmem>>, %arg3: memref<1x64xf32, #tpu.memory_space<vmem>>, %arg4: memref<64x32xf32, #tpu.memory_space<vmem>>, %arg5: memref<1x32xf32, #tpu.memory_space<vmem>>, %arg6: memref<8x32xf32, #tpu.memory_space<vmem>>) attributes {dimension_semantics = [#tpu.dimension_semantics<parallel>], iteration_bounds = array<i64: 2>, scalar_prefetch = 0 : i64, scratch_operands = 0 : i64, tpu.core_type = #tpu.core_type<tc>, window_params = [{transform_indices = @transform_0, window_bounds = array<i64: 8, 32>}, {pipeline_mode = #tpu.pipeline_mode<synchronous>, transform_indices = @transform_1, window_bounds = array<i64: 32, 64>}, {pipeline_mode = #tpu.pipeline_mode<synchronous>, transform_indices = @transform_2, window_bounds = array<i64: 1, 64>}, {pipeline_mode = #tpu.pipeline_mode<synchronous>, transform_indices = @transform_3, window_bounds = array<i64: 64, 32>}, {pipeline_mode = #tpu.pipeline_mode<synchronous>, transform_indices = @transform_4, window_bounds = array<i64: 1, 32>}, {transform_indices = @transform_5, window_bounds = array<i64: 8, 32>}]} {
    %c0 = arith.constant 0 : index
    %c0_0 = arith.constant 0 : index
    %0 = vector.load %arg1[%c0, %c0_0] : memref<8x32xf32, #tpu.memory_space<vmem>>, vector<8x32xf32>
    %c0_1 = arith.constant 0 : index
    %c0_2 = arith.constant 0 : index
    %1 = vector.load %arg2[%c0_1, %c0_2] : memref<32x64xf32, #tpu.memory_space<vmem>>, vector<32x64xf32>
    %2 = arith.truncf %1 : vector<32x64xf32> to vector<32x64xbf16>
    %c0_3 = arith.constant 0 : index
    %c0_4 = arith.constant 0 : index
    %3 = vector.load %arg3[%c0_3, %c0_4] : memref<1x64xf32, #tpu.memory_space<vmem>>, vector<1x64xf32>
    %4 = arith.truncf %0 : vector<8x32xf32> to vector<8x32xbf16>
    %cst = arith.constant dense<0.000000e+00> : vector<8x64xf32>
    %5 = tpu.matmul %4, %2, %cst {dimension_numbers = #tpu.dot_dimension_numbers<[1], [0], [0], [1], [0, 0, 1, 1], [], []>} : vector<8x32xbf16>, vector<32x64xbf16>, vector<8x64xf32> -> vector<8x64xf32>
    %6 = vector.broadcast %3 : vector<1x64xf32> to vector<8x64xf32>
    %7 = arith.addf %5, %6 : vector<8x64xf32>
    %cst_5 = arith.constant 0.000000e+00 : f32
    %8 = vector.broadcast %cst_5 : f32 to vector<8x64xf32>
    %9 = arith.maximumf %7, %8 : vector<8x64xf32>
    %c0_6 = arith.constant 0 : index
    %c0_7 = arith.constant 0 : index
    %10 = vector.load %arg4[%c0_6, %c0_7] : memref<64x32xf32, #tpu.memory_space<vmem>>, vector<64x32xf32>
    %11 = arith.truncf %10 : vector<64x32xf32> to vector<64x32xbf16>
    %c0_8 = arith.constant 0 : index
    %c0_9 = arith.constant 0 : index
    %12 = vector.load %arg5[%c0_8, %c0_9] : memref<1x32xf32, #tpu.memory_space<vmem>>, vector<1x32xf32>
    %13 = arith.truncf %9 : vector<8x64xf32> to vector<8x64xbf16>
    %cst_10 = arith.constant dense<0.000000e+00> : vector<8x32xf32>
    %14 = tpu.matmul %13, %11, %cst_10 {dimension_numbers = #tpu.dot_dimension_numbers<[1], [0], [0], [1], [0, 0, 1, 1], [], []>} : vector<8x64xbf16>, vector<64x32xbf16>, vector<8x32xf32> -> vector<8x32xf32>
    %15 = vector.broadcast %12 : vector<1x32xf32> to vector<8x32xf32>
    %16 = arith.addf %14, %15 : vector<8x32xf32>
    %cst_11 = arith.constant 0.000000e+00 : f32
    %17 = vector.broadcast %cst_11 : f32 to vector<8x32xf32>
    %18 = arith.maximumf %16, %17 : vector<8x32xf32>
    %c0_12 = arith.constant 0 : index
    %c0_13 = arith.constant 0 : index
    %19 = vector.load %arg6[%c0_12, %c0_13] : memref<8x32xf32, #tpu.memory_space<vmem>>, vector<8x32xf32>
    tpu.vector_store %arg6[%c0_12, %c0_13], %18 {strides = array<i32>} : memref<8x32xf32, #tpu.memory_space<vmem>>, vector<8x32xf32>,
    return
  }
  func.func @transform_0(%arg0: i32) -> (i32, i32) {
    %c0_i32 = arith.constant 0 : i32
    %c0_i32_0 = arith.constant 0 : i32
    return %arg0, %c0_i32 : i32, i32
  }
  func.func @transform_1(%arg0: i32) -> (i32, i32) {
    %c0_i32 = arith.constant 0 : i32
    %c0_i32_0 = arith.constant 0 : i32
    %c0_i32_1 = arith.constant 0 : i32
    return %c0_i32, %c0_i32_0 : i32, i32
  }
  func.func @transform_2(%arg0: i32) -> (i32, i32) {
    %c0_i32 = arith.constant 0 : i32
    %c0_i32_0 = arith.constant 0 : i32
    %c0_i32_1 = arith.constant 0 : i32
    return %c0_i32, %c0_i32_0 : i32, i32
  }
  func.func @transform_3(%arg0: i32) -> (i32, i32) {
    %c0_i32 = arith.constant 0 : i32
    %c0_i32_0 = arith.constant 0 : i32
    %c0_i32_1 = arith.constant 0 : i32
    return %c0_i32, %c0_i32_0 : i32, i32
  }
  func.func @transform_4(%arg0: i32) -> (i32, i32) {
    %c0_i32 = arith.constant 0 : i32
    %c0_i32_0 = arith.constant 0 : i32
    %c0_i32_1 = arith.constant 0 : i32
    return %c0_i32, %c0_i32_0 : i32, i32
  }
  func.func @transform_5(%arg0: i32) -> (i32, i32) {
    %c0_i32 = arith.constant 0 : i32
    %c0_i32_0 = arith.constant 0 : i32
    return %arg0, %c0_i32 : i32, i32
  }
}

</mosaic_0001>

<llo_original>
// kernel: tpu_custom_call.1
$region0: #{tpu_custom_call.1}
  #allocation0 [shape = 'u32[]', space=smem, size = 0x4, offset = 0x4, fixed_abs, tag = 'smem constant byte address 0x4 - core index']
  #allocation1 [shape = 'u32[144,128]{1,0:T(1,128)}', space=vmem, size = 0x12000, scoped, tag = 'internal scratch']
  %s0 = inlined_call_operand.vmem [shape: f32[16,32], index: 0, kind: input, shape index: {}]
  %s1 = inlined_call_operand.vmem [shape: f32[32,64], index: 1, kind: input, shape index: {}]
  %s2 = inlined_call_operand.vmem [shape: f32[1,64], index: 2, kind: input, shape index: {}]
  %s3 = inlined_call_operand.vmem [shape: f32[64,32], index: 3, kind: input, shape index: {}]
  %s4 = inlined_call_operand.vmem [shape: f32[1,32], index: 4, kind: input, shape index: {}]
  %s5 = inlined_call_operand.hbm [shape: f32[16,32], index: 5, kind: output, shape index: {}]
  %s6 = sld [smem:[#allocation0]]
  $region53: #{tpu_custom_call.1} parent=0
    _
  %s8 = ssub.s32 1, %s6
  %s9 = scalar_select 0, %s8, %s6
  $region1: #{tpu_custom_call.1} parent=0
    #allocation2 [shape = 'u8[8192]{0}', space=vmem, size = 0x2000, scoped, tag = 'output window, operand 0']
    #allocation3 [shape = 's32[2]{0}', space=sflag, size = 0x8, scoped, tag = 'scoped memory for tpu_custom_call.1']
    %10 = vsyncpa [#allocation3], 0
    %s11 = scalar_lea.sflag [#allocation3], 1
    %12 = vsyncpa %s11, 0
    loop: start=0, step=1, limit=4
    $region2: #{tpu_custom_call.1} parent=1 // loop_pre_header
      _
    $region3: #{tpu_custom_call.1} parent=1 // loop_header
      %s14 = sphi 0, %s18
      %p15 = scmp.ge.s32.totalorder %s14, 4
      %s24 = sphi 0, %s26
      %s27 = sphi 0, %s24
      %s28 = sphi 0, %s27
      %s44 = sphi 0, %s28
      %s48 = sphi 0, %s48
      %s50 = sphi 0, %s48
      %s51 = sphi 0, %s50
      %s65 = sphi 0, %s51
      %s69 = sphi 0, %s69
      %s71 = sphi 0, %s69
      %s72 = sphi 0, %s71
      %s86 = sphi 0, %s72
      %s90 = sphi 0, %s90
      %s92 = sphi 0, %s90
      %s93 = sphi 0, %s92
      %s107 = sphi 0, %s93
      %s111 = sphi 0, %s111
      %s113 = sphi 0, %s111
      %s114 = sphi 0, %s113
      %s128 = sphi 0, %s114
      %s134 = sphi 0, %s136
      %s137 = sphi 0, %s134
      %s138 = sphi 0, %s137
      %s154 = sphi 0, %s138
    $region4: #{tpu_custom_call.1} parent=1 // loop_header_branch
      %17 = sbr.rel (%p15) target = $region8
    $region5: #{tpu_custom_call.1} parent=1 // loop_body
      %s19 = ssub.s32 %s14, 1
      %s20 = ssub.s32 %s14, 2
      %s21 = sadd.s32 %s14, 1
      %s22 = ssub.s32 %s14, %s21
      %p23 = scmp.eq.s32.totalorder %s22, 0
      %s25 = sadd.s32 %s24, 1
      %s26 = scalar_select %p23, %s24, %s25
      %p29 = pneg %p23
      %p30 = scmp.eq.s32.totalorder %s14, 1
      %p31 = por %p29, %p30
      %p32 = scmp.ne.s32.totalorder %s24, %s27
      %p33 = scmp.eq.s32.totalorder %s14, 0
      %p34 = por %p32, %p33
      %p35 = scmp.ne.s32.totalorder %s24, %s27
      %p36 = scmp.eq.s32.totalorder %s19, 1
      %p37 = por %p35, %p36
      %p38 = scmp.ne.s32.totalorder %s27, %s28
      %p39 = scmp.eq.s32.totalorder %s19, 0
      %p40 = por %p38, %p39
      %p41 = scmp.ne.s32.totalorder %s27, %s28
      %p42 = scmp.eq.s32.totalorder %s20, 1
      %p43 = por %p41, %p42
      %p45 = scmp.ne.s32.totalorder %s28, %s44
      %p46 = scmp.eq.s32.totalorder %s20, 0
      %p47 = por %p45, %p46
      %s49 = sadd.s32 %s48, 1
      %p52 = scmp.eq.s32.totalorder %s14, 1
      %p53 = scmp.ne.s32.totalorder %s48, %s50
      %p54 = scmp.eq.s32.totalorder %s14, 0
      %p55 = por %p53, %p54
      %p56 = scmp.ne.s32.totalorder %s48, %s50
      %p57 = scmp.eq.s32.totalorder %s19, 1
      %p58 = por %p56, %p57
      %p59 = scmp.ne.s32.totalorder %s50, %s51
      %p60 = scmp.eq.s32.totalorder %s19, 0
      %p61 = por %p59, %p60
      %p62 = scmp.ne.s32.totalorder %s50, %s51
      %p63 = scmp.eq.s32.totalorder %s20, 1
      %p64 = por %p62, %p63
      %p66 = scmp.ne.s32.totalorder %s51, %s65
      %p67 = scmp.eq.s32.totalorder %s20, 0
      %p68 = por %p66, %p67
      %s70 = sadd.s32 %s69, 1
      %p73 = scmp.eq.s32.totalorder %s14, 1
      %p74 = scmp.ne.s32.totalorder %s69, %s71
      %p75 = scmp.eq.s32.totalorder %s14, 0
      %p76 = por %p74, %p75
      %p77 = scmp.ne.s32.totalorder %s69, %s71
      %p78 = scmp.eq.s32.totalorder %s19, 1
      %p79 = por %p77, %p78
      %p80 = scmp.ne.s32.totalorder %s71, %s72
      %p81 = scmp.eq.s32.totalorder %s19, 0
      %p82 = por %p80, %p81
      %p83 = scmp.ne.s32.totalorder %s71, %s72
      %p84 = scmp.eq.s32.totalorder %s20, 1
      %p85 = por %p83, %p84
      %p87 = scmp.ne.s32.totalorder %s72, %s86
      %p88 = scmp.eq.s32.totalorder %s20, 0
      %p89 = por %p87, %p88
      %s91 = sadd.s32 %s90, 1
      %p94 = scmp.eq.s32.totalorder %s14, 1
      %p95 = scmp.ne.s32.totalorder %s90, %s92
      %p96 = scmp.eq.s32.totalorder %s14, 0
      %p97 = por %p95, %p96
      %p98 = scmp.ne.s32.totalorder %s90, %s92
      %p99 = scmp.eq.s32.totalorder %s19, 1
      %p100 = por %p98, %p99
      %p101 = scmp.ne.s32.totalorder %s92, %s93
      %p102 = scmp.eq.s32.totalorder %s19, 0
      %p103 = por %p101, %p102
      %p104 = scmp.ne.s32.totalorder %s92, %s93
      %p105 = scmp.eq.s32.totalorder %s20, 1
      %p106 = por %p104, %p105
      %p108 = scmp.ne.s32.totalorder %s93, %s107
      %p109 = scmp.eq.s32.totalorder %s20, 0
      %p110 = por %p108, %p109
      %s112 = sadd.s32 %s111, 1
      %p115 = scmp.eq.s32.totalorder %s14, 1
      %p116 = scmp.ne.s32.totalorder %s111, %s113
      %p117 = scmp.eq.s32.totalorder %s14, 0
      %p118 = por %p116, %p117
      %p119 = scmp.ne.s32.totalorder %s111, %s113
      %p120 = scmp.eq.s32.totalorder %s19, 1
      %p121 = por %p119, %p120
      %p122 = scmp.ne.s32.totalorder %s113, %s114
      %p123 = scmp.eq.s32.totalorder %s19, 0
      %p124 = por %p122, %p123
      %p125 = scmp.ne.s32.totalorder %s113, %s114
      %p126 = scmp.eq.s32.totalorder %s20, 1
      %p127 = por %p125, %p126
      %p129 = scmp.ne.s32.totalorder %s114, %s128
      %p130 = scmp.eq.s32.totalorder %s20, 0
      %p131 = por %p129, %p130
      %s132 = ssub.s32 %s14, %s21
      %p133 = scmp.eq.s32.totalorder %s132, 0
      %s135 = sadd.s32 %s134, 1
      %s136 = scalar_select %p133, %s134, %s135
      %p139 = pneg %p133
      %p140 = scmp.eq.s32.totalorder %s14, 1
      %p141 = por %p139, %p140
      %p142 = scmp.ne.s32.totalorder %s134, %s137
      %p143 = scmp.eq.s32.totalorder %s14, 0
      %p144 = por %p142, %p143
      %p145 = scmp.ne.s32.totalorder %s134, %s137
      %p146 = scmp.eq.s32.totalorder %s19, 1
      %p147 = por %p145, %p146
      %p148 = scmp.ne.s32.totalorder %s137, %s138
      %p149 = scmp.eq.s32.totalorder %s19, 0
      %p150 = por %p148, %p149
      %p151 = scmp.ne.s32.totalorder %s137, %s138
      %p152 = scmp.eq.s32.totalorder %s20, 1
      %p153 = por %p151, %p152
      %p155 = scmp.ne.s32.totalorder %s138, %s154
      %p156 = scmp.eq.s32.totalorder %s20, 0
      %p157 = por %p155, %p156
      %p158 = scmp.le.s32.totalorder 1, %s14
      %p159 = scmp.lt.s32.totalorder %s14, 3
      %p160 = pnand %p158, %p159
      %p161 = pneg %p160
      // Predicated region
      $region9: #{tpu_custom_call.1} parent=5 // pred_check
        _
      $region10: #{tpu_custom_call.1} parent=5 // pred_check_branch
        %163 = sbr.rel (%p160) target = $region12
      $region11: #{tpu_custom_call.1} parent=5 // pred_region
        %s164 = ssub.s32 %s14, 1
        // Predicated region
        $region13: #{tpu_custom_call.1} parent=11 // pred_check
          %p165 = pneg %p61
        $region14: #{tpu_custom_call.1} parent=11 // pred_check_branch
          %167 = sbr.rel (%p165) target = $region16
        $region15: #{tpu_custom_call.1} parent=11 // pred_region
          _
        $region16: #{tpu_custom_call.1} parent=11 // pred_fallthru
          _
        // Predicated region
        $region17: #{tpu_custom_call.1} parent=11 // pred_check
          %p168 = pneg %p82
        $region18: #{tpu_custom_call.1} parent=11 // pred_check_branch
          %170 = sbr.rel (%p168) target = $region20
        $region19: #{tpu_custom_call.1} parent=11 // pred_region
          _
        $region20: #{tpu_custom_call.1} parent=11 // pred_fallthru
          _
        // Predicated region
        $region21: #{tpu_custom_call.1} parent=11 // pred_check
          %p171 = pneg %p103
        $region22: #{tpu_custom_call.1} parent=11 // pred_check_branch
          %173 = sbr.rel (%p171) target = $region24
        $region23: #{tpu_custom_call.1} parent=11 // pred_region
          _
        $region24: #{tpu_custom_call.1} parent=11 // pred_fallthru
          _
        // Predicated region
        $region25: #{tpu_custom_call.1} parent=11 // pred_check
          %p174 = pneg %p124
        $region26: #{tpu_custom_call.1} parent=11 // pred_check_branch
          %176 = sbr.rel (%p174) target = $region28
        $region27: #{tpu_custom_call.1} parent=11 // pred_region
          _
        $region28: #{tpu_custom_call.1} parent=11 // pred_fallthru
          _
      $region12: #{tpu_custom_call.1} parent=5 // pred_fallthru
        _
      %p177 = scmp.lt.s32.totalorder %s14, 2
      // Predicated region
      $region29: #{tpu_custom_call.1} parent=5 // pred_check
        %p178 = pneg %p177
      $region30: #{tpu_custom_call.1} parent=5 // pred_check_branch
        %180 = sbr.rel (%p178) target = $region32
      $region31: #{tpu_custom_call.1} parent=5 // pred_region
        // Predicated region
        $region33: #{tpu_custom_call.1} parent=31 // pred_check
          %p181 = pneg %p34
        $region34: #{tpu_custom_call.1} parent=31 // pred_check_branch
          %183 = sbr.rel (%p181) target = $region36
        $region35: #{tpu_custom_call.1} parent=31 // pred_region
          %p184 = scmp.lt.s32.totalorder %s14, 1
          %s185 = scalar_select %p184, %s14, 1
          %s186 = smul.addr %s185, 8
          %s187 = scalar_lea.vmem %s0, %s186
        $region36: #{tpu_custom_call.1} parent=31 // pred_fallthru
          _
      $region32: #{tpu_custom_call.1} parent=5 // pred_fallthru
        _
      %p188 = scmp.le.s32.totalorder 1, %s14
      %p189 = scmp.lt.s32.totalorder %s14, 3
      %p190 = pnand %p188, %p189
      %p191 = pneg %p190
      // Predicated region
      $region37: #{tpu_custom_call.1} parent=5 // pred_check
        _
      $region38: #{tpu_custom_call.1} parent=5 // pred_check_branch
        %193 = sbr.rel (%p190) target = $region40
      $region39: #{tpu_custom_call.1} parent=5 // pred_region
        %s194 = ssub.s32 %s14, 1
        %p195 = scmp.lt.s32.totalorder %s19, 1
        %s196 = scalar_select %p195, %s19, 1
        %s197 = smul.addr %s196, 8
        %s198 = scalar_lea.vmem %s0, %s197
        %p199 = pneg %p40
        %p200 = pneg %p37
        %p201 = pneg %p61
        %p202 = pneg %p58
        %p203 = pneg %p82
        %p204 = pneg %p79
        %p205 = pneg %p103
        %p206 = pneg %p100
        %p207 = pneg %p124
        %p208 = pneg %p121
        %p209 = pneg %p150
        %p210 = pneg %p147
        %s211 = sand.u32 %s137, 1
        %s212 = scalar_lea.sflag [#allocation3], %s211
        %s213 = sand.u32 %s137, 1
        %s214 = smul.addr %s213, 8
        %s215 = scalar_lea.vmem [#allocation2], %s214
        %p216 = scmp.lt.s32.totalorder %s19, 1
        %s217 = scalar_select %p216, %s19, 1
        %s218 = smul.addr %s217, 8
        %s219 = scalar_lea.vmem %s0, %s218
        %v221 = vld [vmem:[%s219] sm:$0xff]
        %v222 = vld [vmem:[%s1] sm:$0xff]
        %v223 = vld [vmem:[%s1 + $0x8] sm:$0xff]
        %v224 = vld [vmem:[%s1 + $0x10] sm:$0xff]
        %v225 = vld [vmem:[%s1 + $0x18] sm:$0xff]
        %v226 = vpack.c.bf16 %v223, %v222
        %v227 = vpack.c.bf16 %v225, %v224
        %v228 = vld [vmem:[%s2] sm:$0x1]
        %v229 = vpack.c.bf16 %v221, %v221
        %v231 = vlaneseq
        %v232 = vshrl.u32 %v231, 7
        %v233 = vsub.s32 0, %v232
        %v234 = vrot.slane %v228, %v233
        %vm236 = vcmask 261120
        %v238 = vsel %vm236, %v229, 0
        %240 = vmatprep.subr.bf16.mxu0 0
        %241 = vmatpush1.bf16.msra.mxu0 %v226
        %242 = vmatprep.subr.bf16.mxu0 0
        %243 = vmatpush1.bf16.msra.mxu0 %v227
        %244 = vmatprep.subr.bf16.mxu0 0
        %245 = vmatpush1.bf16.msra.mxu0 0
        %246 = vmatprep.subr.bf16.mxu0 0
        %247 = vmatpush1.bf16.msra.mxu0 0
        %248 = vmatprep.subr.bf16.mxu0 0
        %249 = vmatpush1.bf16.msra.mxu0 0
        %250 = vmatprep.subr.bf16.mxu0 0
        %251 = vmatpush1.bf16.msra.mxu0 0
        %252 = vmatprep.subr.bf16.mxu0 0
        %253 = vmatpush1.bf16.msra.mxu0 0
        %254 = vmatprep.subr.bf16.mxu0 0
        %255 = vmatpush1.bf16.msra.mxu0 0
        %256 = vmatprep.subr.bf16.mxu0 0
        %257 = vmatpush1.bf16.msra.mxu0 0
        %258 = vmatprep.subr.bf16.mxu0 0
        %259 = vmatpush1.bf16.msra.mxu0 0
        %260 = vmatprep.subr.bf16.mxu0 0
        %261 = vmatpush1.bf16.msra.mxu0 0
        %262 = vmatprep.subr.bf16.mxu0 0
        %263 = vmatpush1.bf16.msra.mxu0 0
        %264 = vmatprep.subr.bf16.mxu0 0
        %265 = vmatpush1.bf16.msra.mxu0 0
        %266 = vmatprep.subr.bf16.mxu0 0
        %267 = vmatpush1.bf16.msra.mxu0 0
        %268 = vmatprep.subr.bf16.mxu0 0
        %269 = vmatpush1.bf16.msra.mxu0 0
        %270 = vmatprep.subr.bf16.mxu0 0
        %271 = vmatpush1.bf16.msra.mxu0 0
        %272 = vmatprep.mubr.bf16.mxu0 0
        %273 = vmatmul.mubr.bf16.gmra.mrb[0].mxu0 %v238
        %v274 = vpop.f32.mrb[0].mxu0
        %v275 = vadd.f32 %v234, %v274
        %v276 = vpop.f32.mrb[0].mxu0
        %v277 = vpop.f32.mrb[0].mxu0
        %v278 = vpop.f32.mrb[0].mxu0
        %279 = vdwg.mxu0
        %v280 = vmax.f32 %v275, 0.0
        %v281 = vld [vmem:[%s3] sm:$0xff]
        %v282 = vld [vmem:[%s3 + $0x8] sm:$0xff]
        %v283 = vld [vmem:[%s3 + $0x10] sm:$0xff]
        %v284 = vld [vmem:[%s3 + $0x18] sm:$0xff]
        %v285 = vld [vmem:[%s3 + $0x20] sm:$0xff]
        %v286 = vld [vmem:[%s3 + $0x28] sm:$0xff]
        %v287 = vld [vmem:[%s3 + $0x30] sm:$0xff]
        %v288 = vld [vmem:[%s3 + $0x38] sm:$0xff]
        %v289 = vpack.c.bf16 %v282, %v281
        %v290 = vpack.c.bf16 %v284, %v283
        %v291 = vpack.c.bf16 %v286, %v285
        %v292 = vpack.c.bf16 %v288, %v287
        %v293 = vld [vmem:[%s4] sm:$0x1]
        %v294 = vpack.c.bf16 %v280, %v280
        %v296 = vlaneseq
        %v297 = vshrl.u32 %v296, 7
        %v298 = vsub.s32 0, %v297
        %v299 = vrot.slane %v293, %v298
        %vm301 = vcmask 523264
        %v303 = vsel %vm301, %v294, 0
        %305 = vmatprep.subr.bf16.mxu0 0
        %306 = vmatpush1.bf16.msra.mxu0 %v289
        %307 = vmatprep.subr.bf16.mxu0 0
        %308 = vmatpush1.bf16.msra.mxu0 %v290
        %309 = vmatprep.subr.bf16.mxu0 0
        %310 = vmatpush1.bf16.msra.mxu0 %v291
        %311 = vmatprep.subr.bf16.mxu0 0
        %312 = vmatpush1.bf16.msra.mxu0 %v292
        %313 = vmatprep.subr.bf16.mxu0 0
        %314 = vmatpush1.bf16.msra.mxu0 0
        %315 = vmatprep.subr.bf16.mxu0 0
        %316 = vmatpush1.bf16.msra.mxu0 0
        %317 = vmatprep.subr.bf16.mxu0 0
        %318 = vmatpush1.bf16.msra.mxu0 0
        %319 = vmatprep.subr.bf16.mxu0 0
        %320 = vmatpush1.bf16.msra.mxu0 0
        %321 = vmatprep.subr.bf16.mxu0 0
        %322 = vmatpush1.bf16.msra.mxu0 0
        %323 = vmatprep.subr.bf16.mxu0 0
        %324 = vmatpush1.bf16.msra.mxu0 0
        %325 = vmatprep.subr.bf16.mxu0 0
        %326 = vmatpush1.bf16.msra.mxu0 0
        %327 = vmatprep.subr.bf16.mxu0 0
        %328 = vmatpush1.bf16.msra.mxu0 0
        %329 = vmatprep.subr.bf16.mxu0 0
        %330 = vmatpush1.bf16.msra.mxu0 0
        %331 = vmatprep.subr.bf16.mxu0 0
        %332 = vmatpush1.bf16.msra.mxu0 0
        %333 = vmatprep.subr.bf16.mxu0 0
        %334 = vmatpush1.bf16.msra.mxu0 0
        %335 = vmatprep.subr.bf16.mxu0 0
        %336 = vmatpush1.bf16.msra.mxu0 0
        %337 = vmatprep.mubr.bf16.mxu0 0
        %338 = vmatmul.mubr.bf16.gmra.mrb[0].mxu0 %v303
        %v339 = vpop.f32.mrb[0].mxu0
        %v340 = vadd.f32 %v299, %v339
        %v341 = vpop.f32.mrb[0].mxu0
        %v342 = vpop.f32.mrb[0].mxu0
        %v343 = vpop.f32.mrb[0].mxu0
        %344 = vdwg.mxu0
        %v345 = vmax.f32 %v340, 0.0
        %346 = vst.msk [vmem:[%s215] sm:$0xff] %vm236, %v345
        %s347 = sand.u32 %s137, 1
        %s348 = scalar_lea.sflag [#allocation3], %s347
        %s349 = sand.u32 %s137, 1
        %s350 = smul.addr %s349, 8
        %s351 = scalar_lea.vmem [#allocation2], %s350
        // Predicated region
        $region41: #{tpu_custom_call.1} parent=39 // pred_check
          %p352 = pneg %p147
        $region42: #{tpu_custom_call.1} parent=39 // pred_check_branch
          %354 = sbr.rel (%p352) target = $region44
        $region43: #{tpu_custom_call.1} parent=39 // pred_region
          %s356 = ssub.s32 128, 128
          %357 = vsyncadd %s348, %s356
          %s358 = smul.addr %s19, 128
          %s359 = scalar_lea.hbm %s5, %s358
          %s361 = sshll.u32 %s351, 4
          %s362 = int_to_ptr.vmem [resolvable:$true] %s361
          %364 = dma.vmem_to_hbm [thread:$0]  %s362, 128, %s359, %s348
        $region44: #{tpu_custom_call.1} parent=39 // pred_fallthru
          _
      $region40: #{tpu_custom_call.1} parent=5 // pred_fallthru
        _
      %p365 = scmp.le.s32.totalorder 2, %s14
      // Predicated region
      $region45: #{tpu_custom_call.1} parent=5 // pred_check
        %p366 = pneg %p365
      $region46: #{tpu_custom_call.1} parent=5 // pred_check_branch
        %368 = sbr.rel (%p366) target = $region48
      $region47: #{tpu_custom_call.1} parent=5 // pred_region
        %s369 = ssub.s32 %s14, 2
        // Predicated region
        $region49: #{tpu_custom_call.1} parent=47 // pred_check
          %p370 = pneg %p153
        $region50: #{tpu_custom_call.1} parent=47 // pred_check_branch
          %372 = sbr.rel (%p370) target = $region52
        $region51: #{tpu_custom_call.1} parent=47 // pred_region
          %s373 = sand.u32 %s138, 1
          %s374 = scalar_lea.sflag [#allocation3], %s373
          %s375 = sand.u32 %s138, 1
          %s376 = smul.addr %s375, 8
          %s377 = scalar_lea.vmem [#allocation2], %s376
          %378 = dma.done %s374, 128
        $region52: #{tpu_custom_call.1} parent=47 // pred_fallthru
          _
      $region48: #{tpu_custom_call.1} parent=5 // pred_fallthru
        _
    $region6: #{tpu_custom_call.1} parent=1 // loop_footer
      %s18 = sadd.s32 1, %s14
    $region7: #{tpu_custom_call.1} parent=1 // loop_footer_branch
      %13 = sbr.rel target = $region3
    $region8: #{tpu_custom_call.1} parent=1 // loop_exit
      _
    %379 = vsyncpa [#allocation3], 1
    %s380 = scalar_lea.sflag [#allocation3], 1
    %381 = vsyncpa %s380, 1

</llo_original>
